<compile_context>
chip_gen: v6e
topology: v6e:2x2x1
jax: 0.10.0
libtpu: 0.0.40
codegen_flags: <defaults>
</compile_context>

<pallas_src>
import jax
import jax.numpy as jnp
from jax.experimental import pallas as pl
from jax.experimental.pallas import tpu as pltpu


def _round_up(x, m):
    return ((x + m - 1) // m) * m


# ----------------------------------------------------------------------------
# Kernel: one batch tile per grid step, all K components fused.
# ----------------------------------------------------------------------------
def gmm_generator_fused_kernel(x_ref,
                               w1_ref, b1_ref,
                               w2_ref, b2_ref,
                               w3_ref, b3_ref,
                               w4_ref, b4_ref,
                               s_ref, out_ref):
    x = x_ref[...]                                   # (TN, V), already f32

    h = jnp.dot(x, w1_ref[...], preferred_element_type=jnp.float32) + b1_ref[...]
    h = jnp.maximum(h, 0.0)
    h = jnp.dot(h, w2_ref[...], preferred_element_type=jnp.float32) + b2_ref[...]
    h = jnp.maximum(h, 0.0)
    h = jnp.dot(h, w3_ref[...], preferred_element_type=jnp.float32) + b3_ref[...]
    h = jnp.maximum(h, 0.0)
    p = jnp.tanh(
        jnp.dot(h, w4_ref[...], preferred_element_type=jnp.float32) + b4_ref[...]
    )                                                # (TN, OUT_PAD), padding lanes = tanh(0) = 0

    # Sum over components with a static 0/1 selection matrix: column d of the
    # result is sum_k p[:, k*Dout + d].  Keeps the reduction on the MXU and the
    # final store lane-dense (full 128-wide, no masked partial store).
    out_ref[...] = jnp.dot(p, s_ref[...], preferred_element_type=jnp.float32)


# ----------------------------------------------------------------------------
# Host-side packing of per-component weights into fused lane-dense form.
# ----------------------------------------------------------------------------
def _block_diag(ws):
    """(K, a, b) stacked blocks -> (K*a, K*b) block-diagonal matrix."""
    K, a, b = ws.shape
    eye = jnp.eye(K, dtype=ws.dtype)
    return jnp.einsum("kj,kil->kijl", eye, ws).reshape(K * a, K * b)


def pack_fused_params(params, kh_pad, out_pad):
    w1, b1, w2, b2, w3, b3, w4, b4 = params
    K, V, H = w1.shape
    Dout = w4.shape[-1]
    KH, KD = K * H, K * Dout
    f32 = jnp.float32

    w1c = jnp.zeros((V, kh_pad), f32).at[:, :KH].set(
        jnp.transpose(w1, (1, 0, 2)).reshape(V, KH))
    b1c = jnp.zeros((1, kh_pad), f32).at[:, :KH].set(b1.reshape(1, KH))

    w2c = jnp.zeros((kh_pad, kh_pad), f32).at[:KH, :KH].set(_block_diag(w2))
    b2c = jnp.zeros((1, kh_pad), f32).at[:, :KH].set(b2.reshape(1, KH))

    w3c = jnp.zeros((kh_pad, kh_pad), f32).at[:KH, :KH].set(_block_diag(w3))
    b3c = jnp.zeros((1, kh_pad), f32).at[:, :KH].set(b3.reshape(1, KH))

    w4c = jnp.zeros((kh_pad, out_pad), f32).at[:KH, :KD].set(_block_diag(w4))
    b4c = jnp.zeros((1, out_pad), f32).at[:, :KD].set(b4.reshape(1, KD))

    # Selection / summation matrix over components.
    rows = (jnp.arange(K)[:, None] * Dout + jnp.arange(Dout)[None, :]).reshape(-1)
    cols = jnp.tile(jnp.arange(Dout), K)
    s = jnp.zeros((out_pad, out_pad), f32).at[rows, cols].set(1.0)

    return (w1c, b1c, w2c, b2c, w3c, b3c, w4c, b4c, s)


# ----------------------------------------------------------------------------
# Wrapper.
# ----------------------------------------------------------------------------
def generator_forward(x, params, *, row_tile=256):
    """x: (N, V) float32.  params: tuple of stacked per-component weights."""
    w1, w4 = params[0], params[6]
    K, V, H = w1.shape
    Dout = w4.shape[-1]
    N = x.shape[0]

    KH_PAD = _round_up(K * H, 128)                 # fused hidden width (lane multiple)
    OUT_PAD = _round_up(max(K * Dout, Dout), 128)  # lane-dense output slab

    packed = pack_fused_params(params, KH_PAD, OUT_PAD)

    # Batch tiling: largest tile <= row_tile, padded to a sublane multiple.
    TN = min(row_tile, _round_up(N, 8))
    N_pad = _round_up(N, TN)
    if N_pad != N:
        x = jnp.pad(x, ((0, N_pad - N), (0, 0)))
    grid = (N_pad // TN,)

    flops = 2 * N_pad * (V * KH_PAD + 2 * KH_PAD * KH_PAD
                         + KH_PAD * OUT_PAD + OUT_PAD * OUT_PAD)
    bytes_accessed = 4 * (N_pad * V + N_pad * OUT_PAD
                          + V * KH_PAD + 2 * KH_PAD * KH_PAD + KH_PAD * OUT_PAD
                          + OUT_PAD * OUT_PAD + 3 * KH_PAD + OUT_PAD)
    cost = pl.CostEstimate(flops=int(flops),
                           transcendentals=int(N_pad * OUT_PAD),
                           bytes_accessed=int(bytes_accessed))

    # Fused weights / biases / selection matrix are grid-invariant resident blocks.
    in_specs = [pl.BlockSpec((TN, V), lambda i: (i, 0))]
    in_specs += [pl.BlockSpec(a.shape, lambda i: (0, 0)) for a in packed]

    out = pl.pallas_call(
        gmm_generator_fused_kernel,
        out_shape=jax.ShapeDtypeStruct((N_pad, OUT_PAD), jnp.float32),
        grid_spec=pltpu.PrefetchScalarGridSpec(
            num_scalar_prefetch=0,
            grid=grid,
            in_specs=in_specs,
            out_specs=pl.BlockSpec((TN, OUT_PAD), lambda i: (i, 0)),
        ),
        compiler_params=pltpu.CompilerParams(
            dimension_semantics=("parallel",),  # batch axis -> shards across v7x TCs
        ),
        cost_estimate=cost,
    )(x, *packed)

    return out[:N, :Dout]


# ----------------------------------------------------------------------------
# Parameter init (matches the module's per-component nn.Linear shapes).
# ----------------------------------------------------------------------------
def init_params(key, num_components, num_variables, dim_hidden, dim_g_output):
    ks = jax.random.split(key, 5)
    K, V, H, D = num_components, num_variables, dim_hidden, dim_g_output

    # mu / cov exist on the module but are dead in forward (x_mu_cov_alpha is
    # never consumed), so they are intentionally not created here.

    def lin(key, fan_in, fan_out):
        kw, kb = jax.random.split(key)
        bound = 1.0 / jnp.sqrt(fan_in)
        w = jax.random.uniform(kw, (K, fan_in, fan_out), jnp.float32, -bound, bound)
        b = jax.random.uniform(kb, (K, 1, fan_out), jnp.float32, -bound, bound)
        return w, b

    w1, b1 = lin(ks[1], V, H)
    w2, b2 = lin(ks[2], H, H)
    w3, b3 = lin(ks[3], H, H)
    w4, b4 = lin(ks[4], H, D)
    return (w1, b1, w2, b2, w3, b3, w4, b4)


def reference_forward(x, params):
    """Pure-JAX per-component reference for the correctness check."""
    (w1, b1, w2, b2, w3, b3, w4, b4) = params
    K = w1.shape[0]
    outs = []
    for i in range(K):
        h = jnp.maximum(x @ w1[i] + b1[i], 0.0)
        h = jnp.maximum(h @ w2[i] + b2[i], 0.0)
        h = jnp.maximum(h @ w3[i] + b3[i], 0.0)
        outs.append(jnp.tanh(h @ w4[i] + b4[i]))
    return jnp.sum(jnp.stack(outs, axis=1), axis=1)


if __name__ == "__main__":
    # Small shapes consistent with the module: Y of shape (num_samples, V),
    # hyperPara.Dim_Hidden = 32, hyperPara.Dim_G_Output = 2, 3 components.
    N, V, H, DOUT, K = 8, 4, 32, 2, 3

    key = jax.random.PRNGKey(0)
    kx, kp = jax.random.split(key)
    x = jax.random.normal(kx, (N, V), jnp.float32)
    params = init_params(kp, K, V, H, DOUT)

    out = generator_forward(x, params)
    out = jax.block_until_ready(out)

    ref = reference_forward(x, params)
    assert out.shape == (N, DOUT)
    assert jnp.allclose(out, ref, rtol=1e-5, atol=1e-5), "mismatch vs reference"

    print("KERNEL_OK")
</pallas_src>

<mosaic_0001>
module attributes {stable_mosaic.version = 11 : i64} {
  func.func @gmm_generator_fused_kernel(%arg0: i32, %arg1: memref<8x4xf32, #tpu.memory_space<vmem>>, %arg2: memref<4x128xf32, #tpu.memory_space<vmem>>, %arg3: memref<1x128xf32, #tpu.memory_space<vmem>>, %arg4: memref<128x128xf32, #tpu.memory_space<vmem>>, %arg5: memref<1x128xf32, #tpu.memory_space<vmem>>, %arg6: memref<128x128xf32, #tpu.memory_space<vmem>>, %arg7: memref<1x128xf32, #tpu.memory_space<vmem>>, %arg8: memref<128x128xf32, #tpu.memory_space<vmem>>, %arg9: memref<1x128xf32, #tpu.memory_space<vmem>>, %arg10: memref<128x128xf32, #tpu.memory_space<vmem>>, %arg11: memref<8x128xf32, #tpu.memory_space<vmem>>) attributes {dimension_semantics = [#tpu.dimension_semantics<parallel>], iteration_bounds = array<i64: 1>, scalar_prefetch = 0 : i64, scratch_operands = 0 : i64, tpu.core_type = #tpu.core_type<tc>, window_params = [{transform_indices = @transform_0, window_bounds = array<i64: 8, 4>}, {pipeline_mode = #tpu.pipeline_mode<synchronous>, transform_indices = @transform_1, window_bounds = array<i64: 4, 128>}, {pipeline_mode = #tpu.pipeline_mode<synchronous>, transform_indices = @transform_2, window_bounds = array<i64: 1, 128>}, {pipeline_mode = #tpu.pipeline_mode<synchronous>, transform_indices = @transform_3, window_bounds = array<i64: 128, 128>}, {pipeline_mode = #tpu.pipeline_mode<synchronous>, transform_indices = @transform_4, window_bounds = array<i64: 1, 128>}, {pipeline_mode = #tpu.pipeline_mode<synchronous>, transform_indices = @transform_5, window_bounds = array<i64: 128, 128>}, {pipeline_mode = #tpu.pipeline_mode<synchronous>, transform_indices = @transform_6, window_bounds = array<i64: 1, 128>}, {pipeline_mode = #tpu.pipeline_mode<synchronous>, transform_indices = @transform_7, window_bounds = array<i64: 128, 128>}, {pipeline_mode = #tpu.pipeline_mode<synchronous>, transform_indices = @transform_8, window_bounds = array<i64: 1, 128>}, {pipeline_mode = #tpu.pipeline_mode<synchronous>, transform_indices = @transform_9, window_bounds = array<i64: 128, 128>}, {transform_indices = @transform_10, window_bounds = array<i64: 8, 128>}]} {
    %c0 = arith.constant 0 : index
    %c0_0 = arith.constant 0 : index
    %0 = vector.load %arg1[%c0, %c0_0] : memref<8x4xf32, #tpu.memory_space<vmem>>, vector<8x4xf32>
    %c0_1 = arith.constant 0 : index
    %c0_2 = arith.constant 0 : index
    %1 = vector.load %arg2[%c0_1, %c0_2] : memref<4x128xf32, #tpu.memory_space<vmem>>, vector<4x128xf32>
    %cst = arith.constant dense<0.000000e+00> : vector<8x128xf32>
    %2 = tpu.matmul %0, %1, %cst {dimension_numbers = #tpu.dot_dimension_numbers<[1], [0], [0], [1], [0, 0, 1, 1], [], []>} : vector<8x4xf32>, vector<4x128xf32>, vector<8x128xf32> -> vector<8x128xf32>
    %c0_3 = arith.constant 0 : index
    %c0_4 = arith.constant 0 : index
    %3 = vector.load %arg3[%c0_3, %c0_4] : memref<1x128xf32, #tpu.memory_space<vmem>>, vector<1x128xf32>
    %4 = vector.broadcast %3 : vector<1x128xf32> to vector<8x128xf32>
    %5 = arith.addf %2, %4 : vector<8x128xf32>
    %cst_5 = arith.constant 0.000000e+00 : f32
    %6 = vector.broadcast %cst_5 : f32 to vector<8x128xf32>
    %7 = arith.maximumf %5, %6 : vector<8x128xf32>
    %c0_6 = arith.constant 0 : index
    %c0_7 = arith.constant 0 : index
    %8 = vector.load %arg4[%c0_6, %c0_7] : memref<128x128xf32, #tpu.memory_space<vmem>>, vector<128x128xf32>
    %cst_8 = arith.constant dense<0.000000e+00> : vector<8x128xf32>
    %9 = tpu.matmul %7, %8, %cst_8 {dimension_numbers = #tpu.dot_dimension_numbers<[1], [0], [0], [1], [0, 0, 1, 1], [], []>} : vector<8x128xf32>, vector<128x128xf32>, vector<8x128xf32> -> vector<8x128xf32>
    %c0_9 = arith.constant 0 : index
    %c0_10 = arith.constant 0 : index
    %10 = vector.load %arg5[%c0_9, %c0_10] : memref<1x128xf32, #tpu.memory_space<vmem>>, vector<1x128xf32>
    %11 = vector.broadcast %10 : vector<1x128xf32> to vector<8x128xf32>
    %12 = arith.addf %9, %11 : vector<8x128xf32>
    %cst_11 = arith.constant 0.000000e+00 : f32
    %13 = vector.broadcast %cst_11 : f32 to vector<8x128xf32>
    %14 = arith.maximumf %12, %13 : vector<8x128xf32>
    %c0_12 = arith.constant 0 : index
    %c0_13 = arith.constant 0 : index
    %15 = vector.load %arg6[%c0_12, %c0_13] : memref<128x128xf32, #tpu.memory_space<vmem>>, vector<128x128xf32>
    %cst_14 = arith.constant dense<0.000000e+00> : vector<8x128xf32>
    %16 = tpu.matmul %14, %15, %cst_14 {dimension_numbers = #tpu.dot_dimension_numbers<[1], [0], [0], [1], [0, 0, 1, 1], [], []>} : vector<8x128xf32>, vector<128x128xf32>, vector<8x128xf32> -> vector<8x128xf32>
    %c0_15 = arith.constant 0 : index
    %c0_16 = arith.constant 0 : index
    %17 = vector.load %arg7[%c0_15, %c0_16] : memref<1x128xf32, #tpu.memory_space<vmem>>, vector<1x128xf32>
    %18 = vector.broadcast %17 : vector<1x128xf32> to vector<8x128xf32>
    %19 = arith.addf %16, %18 : vector<8x128xf32>
    %cst_17 = arith.constant 0.000000e+00 : f32
    %20 = vector.broadcast %cst_17 : f32 to vector<8x128xf32>
    %21 = arith.maximumf %19, %20 : vector<8x128xf32>
    %c0_18 = arith.constant 0 : index
    %c0_19 = arith.constant 0 : index
    %22 = vector.load %arg8[%c0_18, %c0_19] : memref<128x128xf32, #tpu.memory_space<vmem>>, vector<128x128xf32>
    %cst_20 = arith.constant dense<0.000000e+00> : vector<8x128xf32>
    %23 = tpu.matmul %21, %22, %cst_20 {dimension_numbers = #tpu.dot_dimension_numbers<[1], [0], [0], [1], [0, 0, 1, 1], [], []>} : vector<8x128xf32>, vector<128x128xf32>, vector<8x128xf32> -> vector<8x128xf32>
    %c0_21 = arith.constant 0 : index
    %c0_22 = arith.constant 0 : index
    %24 = vector.load %arg9[%c0_21, %c0_22] : memref<1x128xf32, #tpu.memory_space<vmem>>, vector<1x128xf32>
    %25 = vector.broadcast %24 : vector<1x128xf32> to vector<8x128xf32>
    %26 = arith.addf %23, %25 : vector<8x128xf32>
    %27 = math.tanh %26 : vector<8x128xf32>
    %c0_23 = arith.constant 0 : index
    %c0_24 = arith.constant 0 : index
    %28 = vector.load %arg10[%c0_23, %c0_24] : memref<128x128xf32, #tpu.memory_space<vmem>>, vector<128x128xf32>
    %cst_25 = arith.constant dense<0.000000e+00> : vector<8x128xf32>
    %29 = tpu.matmul %27, %28, %cst_25 {dimension_numbers = #tpu.dot_dimension_numbers<[1], [0], [0], [1], [0, 0, 1, 1], [], []>} : vector<8x128xf32>, vector<128x128xf32>, vector<8x128xf32> -> vector<8x128xf32>
    %c0_26 = arith.constant 0 : index
    %c0_27 = arith.constant 0 : index
    %30 = vector.load %arg11[%c0_26, %c0_27] : memref<8x128xf32, #tpu.memory_space<vmem>>, vector<8x128xf32>
    tpu.vector_store %arg11[%c0_26, %c0_27], %29 {strides = array<i32>} : memref<8x128xf32, #tpu.memory_space<vmem>>, vector<8x128xf32>,
    return
  }
  func.func @transform_0(%arg0: i32) -> (i32, i32) {
    %c0_i32 = arith.constant 0 : i32
    %c0_i32_0 = arith.constant 0 : i32
    return %arg0, %c0_i32 : i32, i32
  }
  func.func @transform_1(%arg0: i32) -> (i32, i32) {
    %c0_i32 = arith.constant 0 : i32
    %c0_i32_0 = arith.constant 0 : i32
    %c0_i32_1 = arith.constant 0 : i32
    return %c0_i32, %c0_i32_0 : i32, i32
  }
  func.func @transform_2(%arg0: i32) -> (i32, i32) {
    %c0_i32 = arith.constant 0 : i32
    %c0_i32_0 = arith.constant 0 : i32
    %c0_i32_1 = arith.constant 0 : i32
    return %c0_i32, %c0_i32_0 : i32, i32
  }
  func.func @transform_3(%arg0: i32) -> (i32, i32) {
    %c0_i32 = arith.constant 0 : i32
    %c0_i32_0 = arith.constant 0 : i32
    %c0_i32_1 = arith.constant 0 : i32
    return %c0_i32, %c0_i32_0 : i32, i32
  }
  func.func @transform_4(%arg0: i32) -> (i32, i32) {
    %c0_i32 = arith.constant 0 : i32
    %c0_i32_0 = arith.constant 0 : i32
    %c0_i32_1 = arith.constant 0 : i32
    return %c0_i32, %c0_i32_0 : i32, i32
  }
  func.func @transform_5(%arg0: i32) -> (i32, i32) {
    %c0_i32 = arith.constant 0 : i32
    %c0_i32_0 = arith.constant 0 : i32
    %c0_i32_1 = arith.constant 0 : i32
    return %c0_i32, %c0_i32_0 : i32, i32
  }
  func.func @transform_6(%arg0: i32) -> (i32, i32) {
    %c0_i32 = arith.constant 0 : i32
    %c0_i32_0 = arith.constant 0 : i32
    %c0_i32_1 = arith.constant 0 : i32
    return %c0_i32, %c0_i32_0 : i32, i32
  }
  func.func @transform_7(%arg0: i32) -> (i32, i32) {
    %c0_i32 = arith.constant 0 : i32
    %c0_i32_0 = arith.constant 0 : i32
    %c0_i32_1 = arith.constant 0 : i32
    return %c0_i32, %c0_i32_0 : i32, i32
  }
  func.func @transform_8(%arg0: i32) -> (i32, i32) {
    %c0_i32 = arith.constant 0 : i32
    %c0_i32_0 = arith.constant 0 : i32
    %c0_i32_1 = arith.constant 0 : i32
    return %c0_i32, %c0_i32_0 : i32, i32
  }
  func.func @transform_9(%arg0: i32) -> (i32, i32) {
    %c0_i32 = arith.constant 0 : i32
    %c0_i32_0 = arith.constant 0 : i32
    %c0_i32_1 = arith.constant 0 : i32
    return %c0_i32, %c0_i32_0 : i32, i32
  }
  func.func @transform_10(%arg0: i32) -> (i32, i32) {
    %c0_i32 = arith.constant 0 : i32
    %c0_i32_0 = arith.constant 0 : i32
    return %arg0, %c0_i32 : i32, i32
  }
}

</mosaic_0001>

<llo_original>
// kernel: tpu_custom_call.1
$region0: #{tpu_custom_call.1}
  #allocation0 [shape = 'u32[]', space=smem, size = 0x4, offset = 0x4, fixed_abs, tag = 'smem constant byte address 0x4 - core index']
  #allocation1 [shape = 'u32[144,128]{1,0:T(1,128)}', space=vmem, size = 0x12000, scoped, tag = 'internal scratch']
  %s0 = inlined_call_operand.vmem [shape: f32[8,4], index: 0, kind: input, shape index: {}]
  %s1 = inlined_call_operand.vmem [shape: f32[4,128], index: 1, kind: input, shape index: {}]
  %s2 = inlined_call_operand.vmem [shape: f32[1,128], index: 2, kind: input, shape index: {}]
  %s3 = inlined_call_operand.hbm [shape: f32[128,128], index: 3, kind: input, shape index: {}]
  %s4 = inlined_call_operand.vmem [shape: f32[1,128], index: 4, kind: input, shape index: {}]
  %s5 = inlined_call_operand.hbm [shape: f32[128,128], index: 5, kind: input, shape index: {}]
  %s6 = inlined_call_operand.vmem [shape: f32[1,128], index: 6, kind: input, shape index: {}]
  %s7 = inlined_call_operand.hbm [shape: f32[128,128], index: 7, kind: input, shape index: {}]
  %s8 = inlined_call_operand.vmem [shape: f32[1,128], index: 8, kind: input, shape index: {}]
  %s9 = inlined_call_operand.hbm [shape: f32[128,128], index: 9, kind: input, shape index: {}]
  %s10 = inlined_call_operand.hbm [shape: f32[8,128], index: 10, kind: output, shape index: {}]
  %s11 = sld [smem:[#allocation0]]
  $region66: #{tpu_custom_call.1} parent=0
    _
  %s13 = ssub.s32 1, %s11
  %s14 = scalar_select 0, %s13, %s11
  $region1: #{tpu_custom_call.1} parent=0
    #allocation2 [shape = 'u8[65536]{0}', space=vmem, size = 0x10000, scoped, tag = 'input window, operand 3, single buffered']
    #allocation3 [shape = 's32[1]{0}', space=sflag, size = 0x4, scoped, tag = 'scoped memory for tpu_custom_call.1']
    #allocation4 [shape = 's32[1]{0}', space=sflag, size = 0x4, scoped, tag = 'scoped memory for tpu_custom_call.1']
    #allocation5 [shape = 'u8[65536]{0}', space=vmem, size = 0x10000, scoped, tag = 'input window, operand 5, single buffered']
    #allocation6 [shape = 's32[1]{0}', space=sflag, size = 0x4, scoped, tag = 'scoped memory for tpu_custom_call.1']
    #allocation7 [shape = 'u8[65536]{0}', space=vmem, size = 0x10000, scoped, tag = 'input window, operand 7, single buffered']
    #allocation8 [shape = 'u8[65536]{0}', space=vmem, size = 0x10000, scoped, tag = 'input window, operand 9, single buffered']
    #allocation9 [shape = 's32[1]{0}', space=sflag, size = 0x4, scoped, tag = 'scoped memory for tpu_custom_call.1']
    #allocation10 [shape = 'u8[4096]{0}', space=vmem, size = 0x1000, scoped, tag = 'output window, operand 0, single buffered']
    %15 = vsyncpa [#allocation3], 0
    %16 = vsyncpa [#allocation6], 0
    %17 = vsyncpa [#allocation9], 0
    %18 = vsyncpa [#allocation4], 0
    // Predicated region
    $region2: #{tpu_custom_call.1} parent=1 // pred_check
      _
    $region3: #{tpu_custom_call.1} parent=1 // pred_check_branch
      %20 = sbr.rel (0) target = $region5
    $region4: #{tpu_custom_call.1} parent=1 // pred_region
      _
    $region5: #{tpu_custom_call.1} parent=1 // pred_fallthru
      _
    // Predicated region
    $region6: #{tpu_custom_call.1} parent=1 // pred_check
      _
    $region7: #{tpu_custom_call.1} parent=1 // pred_check_branch
      %22 = sbr.rel (0) target = $region9
    $region8: #{tpu_custom_call.1} parent=1 // pred_region
      _
    $region9: #{tpu_custom_call.1} parent=1 // pred_fallthru
      _
    // Predicated region
    $region10: #{tpu_custom_call.1} parent=1 // pred_check
      _
    $region11: #{tpu_custom_call.1} parent=1 // pred_check_branch
      %24 = sbr.rel (0) target = $region13
    $region12: #{tpu_custom_call.1} parent=1 // pred_region
      _
    $region13: #{tpu_custom_call.1} parent=1 // pred_fallthru
      _
    // Predicated region
    $region14: #{tpu_custom_call.1} parent=1 // pred_check
      _
    $region15: #{tpu_custom_call.1} parent=1 // pred_check_branch
      %26 = sbr.rel (0) target = $region17
    $region16: #{tpu_custom_call.1} parent=1 // pred_region
      %s28 = ssub.s32 2048, 2048
      %29 = vsyncadd [#allocation3], %s28
      %s30 = sshll.u32 [#allocation2], 4
      %s31 = int_to_ptr.vmem [resolvable:$true] %s30
      %36 = dma.hbm_to_vmem [thread:$0]  %s3, 2048, %s31, [#allocation3], 128, 128, 8
    $region17: #{tpu_custom_call.1} parent=1 // pred_fallthru
      _
    // Predicated region
    $region18: #{tpu_custom_call.1} parent=1 // pred_check
      _
    $region19: #{tpu_custom_call.1} parent=1 // pred_check_branch
      %38 = sbr.rel (0) target = $region21
    $region20: #{tpu_custom_call.1} parent=1 // pred_region
      _
    $region21: #{tpu_custom_call.1} parent=1 // pred_fallthru
      _
    // Predicated region
    $region22: #{tpu_custom_call.1} parent=1 // pred_check
      _
    $region23: #{tpu_custom_call.1} parent=1 // pred_check_branch
      %40 = sbr.rel (0) target = $region25
    $region24: #{tpu_custom_call.1} parent=1 // pred_region
      %s42 = ssub.s32 2048, 2048
      %43 = vsyncadd [#allocation6], %s42
      %s44 = sshll.u32 [#allocation5], 4
      %s45 = int_to_ptr.vmem [resolvable:$true] %s44
      %50 = dma.hbm_to_vmem [thread:$0]  %s5, 2048, %s45, [#allocation6], 128, 128, 8
    $region25: #{tpu_custom_call.1} parent=1 // pred_fallthru
      _
    // Predicated region
    $region26: #{tpu_custom_call.1} parent=1 // pred_check
      _
    $region27: #{tpu_custom_call.1} parent=1 // pred_check_branch
      %52 = sbr.rel (0) target = $region29
    $region28: #{tpu_custom_call.1} parent=1 // pred_region
      _
    $region29: #{tpu_custom_call.1} parent=1 // pred_fallthru
      _
    // Predicated region
    $region30: #{tpu_custom_call.1} parent=1 // pred_check
      _
    $region31: #{tpu_custom_call.1} parent=1 // pred_check_branch
      %54 = sbr.rel (0) target = $region33
    $region32: #{tpu_custom_call.1} parent=1 // pred_region
      %s56 = ssub.s32 2048, 2048
      %57 = vsyncadd [#allocation6], %s56
      %s58 = sshll.u32 [#allocation7], 4
      %s59 = int_to_ptr.vmem [resolvable:$true] %s58
      %64 = dma.hbm_to_vmem [thread:$0]  %s7, 2048, %s59, [#allocation6], 128, 128, 8
    $region33: #{tpu_custom_call.1} parent=1 // pred_fallthru
      _
    // Predicated region
    $region34: #{tpu_custom_call.1} parent=1 // pred_check
      _
    $region35: #{tpu_custom_call.1} parent=1 // pred_check_branch
      %66 = sbr.rel (0) target = $region37
    $region36: #{tpu_custom_call.1} parent=1 // pred_region
      _
    $region37: #{tpu_custom_call.1} parent=1 // pred_fallthru
      _
    // Predicated region
    $region38: #{tpu_custom_call.1} parent=1 // pred_check
      _
    $region39: #{tpu_custom_call.1} parent=1 // pred_check_branch
      %68 = sbr.rel (0) target = $region41
    $region40: #{tpu_custom_call.1} parent=1 // pred_region
      %s70 = ssub.s32 2048, 2048
      %71 = vsyncadd [#allocation9], %s70
      %s72 = sshll.u32 [#allocation8], 4
      %s73 = int_to_ptr.vmem [resolvable:$true] %s72
      %78 = dma.hbm_to_vmem [thread:$0]  %s9, 2048, %s73, [#allocation9], 128, 128, 8
    $region41: #{tpu_custom_call.1} parent=1 // pred_fallthru
      _
    // Predicated region
    $region42: #{tpu_custom_call.1} parent=1 // pred_check
      _
    $region43: #{tpu_custom_call.1} parent=1 // pred_check_branch
      %80 = sbr.rel (0) target = $region45
    $region44: #{tpu_custom_call.1} parent=1 // pred_region
      %81 = dma.done [#allocation3], 2048
    $region45: #{tpu_custom_call.1} parent=1 // pred_fallthru
      _
    // Predicated region
    $region46: #{tpu_custom_call.1} parent=1 // pred_check
      _
    $region47: #{tpu_custom_call.1} parent=1 // pred_check_branch
      %83 = sbr.rel (0) target = $region49
    $region48: #{tpu_custom_call.1} parent=1 // pred_region
      %84 = dma.done [#allocation6], 2048
    $region49: #{tpu_custom_call.1} parent=1 // pred_fallthru
      _
    // Predicated region
    $region50: #{tpu_custom_call.1} parent=1 // pred_check
      _
    $region51: #{tpu_custom_call.1} parent=1 // pred_check_branch
      %86 = sbr.rel (0) target = $region53
    $region52: #{tpu_custom_call.1} parent=1 // pred_region
      %87 = dma.done [#allocation6], 2048
    $region53: #{tpu_custom_call.1} parent=1 // pred_fallthru
      _
    // Predicated region
    $region54: #{tpu_custom_call.1} parent=1 // pred_check
      _
    $region55: #{tpu_custom_call.1} parent=1 // pred_check_branch
      %89 = sbr.rel (0) target = $region57
    $region56: #{tpu_custom_call.1} parent=1 // pred_region
      %90 = dma.done [#allocation9], 2048
    $region57: #{tpu_custom_call.1} parent=1 // pred_fallthru
      _
    %v91 = vld [vmem:[%s0] sm:$0xff]
    %v92 = vld [vmem:[%s1] sm:$0xf]
    %v93 = vld [vmem:[%s2] sm:$0x1]
    %v95 = vlaneseq
    %v96 = vshrl.u32 %v95, 7
    %v97 = vsub.s32 0, %v96
    %v98 = vrot.slane %v93, %v97
    %vm100 = vcmask 31744
    %v102 = vsel %vm100, %v91, 0
    %vm104 = vcmask 1043456
    %v106 = vsel %vm104, %v92, 0
    %108 = vmatprep.subr.mxu0 0.0
    %109 = vmatpush1.msra.mxu0 0.0
    %110 = vmatprep.subr.mxu0 0.0
    %111 = vmatpush1.msra.mxu0 0.0
    %112 = vmatprep.subr.mxu0 0.0
    %113 = vmatpush1.msra.mxu0 0.0
    %114 = vmatprep.subr.mxu0 0.0
    %115 = vmatpush1.msra.mxu0 0.0
    %116 = vmatprep.subr.mxu0 0.0
    %117 = vmatpush1.msra.mxu0 0.0
    %118 = vmatprep.subr.mxu0 0.0
    %119 = vmatpush1.msra.mxu0 0.0
    %120 = vmatprep.subr.mxu0 0.0
    %121 = vmatpush1.msra.mxu0 0.0
    %122 = vmatprep.subr.mxu0 0.0
    %123 = vmatpush1.msra.mxu0 0.0
    %124 = vmatprep.subr.mxu0 0.0
    %125 = vmatpush1.msra.mxu0 0.0
    %126 = vmatprep.subr.mxu0 0.0
    %127 = vmatpush1.msra.mxu0 0.0
    %128 = vmatprep.subr.mxu0 0.0
    %129 = vmatpush1.msra.mxu0 0.0
    %130 = vmatprep.subr.mxu0 0.0
    %131 = vmatpush1.msra.mxu0 0.0
    %132 = vmatprep.subr.mxu0 0.0
    %133 = vmatpush1.msra.mxu0 0.0
    %134 = vmatprep.subr.mxu0 0.0
    %135 = vmatpush1.msra.mxu0 0.0
    %136 = vmatprep.subr.mxu0 0.0
    %137 = vmatpush1.msra.mxu0 0.0
    %138 = vmatprep.subr.mxu0 0.0
    %139 = vmatpush1.msra.mxu0 %v106
    %140 = vmatprep.subr.mxu0 0.0
    %141 = vmatpush2.msra.mxu0 0.0
    %142 = vmatprep.subr.mxu0 0.0
    %143 = vmatpush2.msra.mxu0 0.0
    %144 = vmatprep.subr.mxu0 0.0
    %145 = vmatpush2.msra.mxu0 0.0
    %146 = vmatprep.subr.mxu0 0.0
    %147 = vmatpush2.msra.mxu0 0.0
    %148 = vmatprep.subr.mxu0 0.0
    %149 = vmatpush2.msra.mxu0 0.0
    %150 = vmatprep.subr.mxu0 0.0
    %151 = vmatpush2.msra.mxu0 0.0
    %152 = vmatprep.subr.mxu0 0.0
    %153 = vmatpush2.msra.mxu0 0.0
    %154 = vmatprep.subr.mxu0 0.0
    %155 = vmatpush2.msra.mxu0 0.0
    %156 = vmatprep.subr.mxu0 0.0
    %157 = vmatpush2.msra.mxu0 0.0
    %158 = vmatprep.subr.mxu0 0.0
    %159 = vmatpush2.msra.mxu0 0.0
    %160 = vmatprep.subr.mxu0 0.0
    %161 = vmatpush2.msra.mxu0 0.0
    %162 = vmatprep.subr.mxu0 0.0
    %163 = vmatpush2.msra.mxu0 0.0
    %164 = vmatprep.subr.mxu0 0.0
    %165 = vmatpush2.msra.mxu0 0.0
    %166 = vmatprep.subr.mxu0 0.0
    %167 = vmatpush2.msra.mxu0 0.0
    %168 = vmatprep.subr.mxu0 0.0
    %169 = vmatpush2.msra.mxu0 0.0
    %170 = vmatprep.subr.mxu0 0.0
    %171 = vmatpush2.msra.mxu0 0.0
    %172 = vmatprep.mubr.f32.mxu0 0.0
    %173 = vmatmul.mubr.f32.gmra.mxu0 %v102
    %v174 = vpop.f32.mrf.mxu0
    %v175 = vadd.f32 %v98, %v174
    %v176 = vpop.f32.mrf.mxu0
    %177 = vdwg.mxu0
    %v178 = vmax.f32 %v175, 0.0
    %v179 = vld [vmem:[#allocation2] sm:$0xff]
    %v180 = vld [vmem:[#allocation2 + $0x8] sm:$0xff]
    %v181 = vld [vmem:[#allocation2 + $0x10] sm:$0xff]
    %v182 = vld [vmem:[#allocation2 + $0x18] sm:$0xff]
    %v183 = vld [vmem:[#allocation2 + $0x20] sm:$0xff]
    %v184 = vld [vmem:[#allocation2 + $0x28] sm:$0xff]
    %v185 = vld [vmem:[#allocation2 + $0x30] sm:$0xff]
    %v186 = vld [vmem:[#allocation2 + $0x38] sm:$0xff]
    %v187 = vld [vmem:[#allocation2 + $0x40] sm:$0xff]
    %v188 = vld [vmem:[#allocation2 + $0x48] sm:$0xff]
    %v189 = vld [vmem:[#allocation2 + $0x50] sm:$0xff]
    %v190 = vld [vmem:[#allocation2 + $0x58] sm:$0xff]
    %v191 = vld [vmem:[#allocation2 + $0x60] sm:$0xff]
    %v192 = vld [vmem:[#allocation2 + $0x68] sm:$0xff]
    %v193 = vld [vmem:[#allocation2 + $0x70] sm:$0xff]
    %v194 = vld [vmem:[#allocation2 + $0x78] sm:$0xff]
    %v195 = vld [vmem:[%s4] sm:$0x1]
    %v197 = vlaneseq
    %v198 = vshrl.u32 %v197, 7
    %v199 = vsub.s32 0, %v198
    %v200 = vrot.slane %v195, %v199
    %202 = vmatprep.subr.mxu0 0.0
    %203 = vmatpush1.msra.mxu0 %v194
    %204 = vmatprep.subr.mxu0 0.0
    %205 = vmatpush1.msra.mxu0 %v193
    %206 = vmatprep.subr.mxu0 0.0
    %207 = vmatpush1.msra.mxu0 %v192
    %208 = vmatprep.subr.mxu0 0.0
    %209 = vmatpush1.msra.mxu0 %v191
    %210 = vmatprep.subr.mxu0 0.0
    %211 = vmatpush1.msra.mxu0 %v190
    %212 = vmatprep.subr.mxu0 0.0
    %213 = vmatpush1.msra.mxu0 %v189
    %214 = vmatprep.subr.mxu0 0.0
    %215 = vmatpush1.msra.mxu0 %v188
    %216 = vmatprep.subr.mxu0 0.0
    %217 = vmatpush1.msra.mxu0 %v187
    %218 = vmatprep.subr.mxu0 0.0
    %219 = vmatpush1.msra.mxu0 %v186
    %220 = vmatprep.subr.mxu0 0.0
    %221 = vmatpush1.msra.mxu0 %v185
    %222 = vmatprep.subr.mxu0 0.0
    %223 = vmatpush1.msra.mxu0 %v184
    %224 = vmatprep.subr.mxu0 0.0
    %225 = vmatpush1.msra.mxu0 %v183
    %226 = vmatprep.subr.mxu0 0.0
    %227 = vmatpush1.msra.mxu0 %v182
    %228 = vmatprep.subr.mxu0 0.0
    %229 = vmatpush1.msra.mxu0 %v181
    %230 = vmatprep.subr.mxu0 0.0
    %231 = vmatpush1.msra.mxu0 %v180
    %232 = vmatprep.subr.mxu0 0.0
    %233 = vmatpush1.msra.mxu0 %v179
    %234 = vmatprep.subr.mxu0 0.0
    %235 = vmatpush2.msra.mxu0 0.0
    %236 = vmatprep.subr.mxu0 0.0
    %237 = vmatpush2.msra.mxu0 0.0
    %238 = vmatprep.subr.mxu0 0.0
    %239 = vmatpush2.msra.mxu0 0.0
    %240 = vmatprep.subr.mxu0 0.0
    %241 = vmatpush2.msra.mxu0 0.0
    %242 = vmatprep.subr.mxu0 0.0
    %243 = vmatpush2.msra.mxu0 0.0
    %244 = vmatprep.subr.mxu0 0.0
    %245 = vmatpush2.msra.mxu0 0.0
    %246 = vmatprep.subr.mxu0 0.0
    %247 = vmatpush2.msra.mxu0 0.0
    %248 = vmatprep.subr.mxu0 0.0
    %249 = vmatpush2.msra.mxu0 0.0
    %250 = vmatprep.subr.mxu0 0.0
    %251 = vmatpush2.msra.mxu0 0.0
    %252 = vmatprep.subr.mxu0 0.0
    %253 = vmatpush2.msra.mxu0 0.0
    %254 = vmatprep.subr.mxu0 0.0
    %255 = vmatpush2.msra.mxu0 0.0
    %256 = vmatprep.subr.mxu0 0.0
    %257 = vmatpush2.msra.mxu0 0.0
    %258 = vmatprep.subr.mxu0 0.0
    %259 = vmatpush2.msra.mxu0 0.0
    %260 = vmatprep.subr.mxu0 0.0
    %261 = vmatpush2.msra.mxu0 0.0
    %262 = vmatprep.subr.mxu0 0.0
    %263 = vmatpush2.msra.mxu0 0.0
    %264 = vmatprep.subr.mxu0 0.0
    %265 = vmatpush2.msra.mxu0 0.0
    %266 = vmatprep.mubr.f32.mxu0 0.0
    %267 = vmatmul.mubr.f32.gmra.mxu0 %v178
    %v268 = vpop.f32.mrf.mxu0
    %v269 = vadd.f32 %v200, %v268
    %v270 = vpop.f32.mrf.mxu0
    %271 = vdwg.mxu0
    %v272 = vmax.f32 %v269, 0.0
    %v273 = vld [vmem:[#allocation5] sm:$0xff]
    %v274 = vld [vmem:[#allocation5 + $0x8] sm:$0xff]
    %v275 = vld [vmem:[#allocation5 + $0x10] sm:$0xff]
    %v276 = vld [vmem:[#allocation5 + $0x18] sm:$0xff]
    %v277 = vld [vmem:[#allocation5 + $0x20] sm:$0xff]
    %v278 = vld [vmem:[#allocation5 + $0x28] sm:$0xff]
    %v279 = vld [vmem:[#allocation5 + $0x30] sm:$0xff]
    %v280 = vld [vmem:[#allocation5 + $0x38] sm:$0xff]
    %v281 = vld [vmem:[#allocation5 + $0x40] sm:$0xff]
    %v282 = vld [vmem:[#allocation5 + $0x48] sm:$0xff]
    %v283 = vld [vmem:[#allocation5 + $0x50] sm:$0xff]
    %v284 = vld [vmem:[#allocation5 + $0x58] sm:$0xff]
    %v285 = vld [vmem:[#allocation5 + $0x60] sm:$0xff]
    %v286 = vld [vmem:[#allocation5 + $0x68] sm:$0xff]
    %v287 = vld [vmem:[#allocation5 + $0x70] sm:$0xff]
    %v288 = vld [vmem:[#allocation5 + $0x78] sm:$0xff]
    %v289 = vld [vmem:[%s6] sm:$0x1]
    %v291 = vlaneseq
    %v292 = vshrl.u32 %v291, 7
    %v293 = vsub.s32 0, %v292
    %v294 = vrot.slane %v289, %v293
    %296 = vmatprep.subr.mxu0 0.0
    %297 = vmatpush1.msra.mxu0 %v288
    %298 = vmatprep.subr.mxu0 0.0
    %299 = vmatpush1.msra.mxu0 %v287
    %300 = vmatprep.subr.mxu0 0.0
    %301 = vmatpush1.msra.mxu0 %v286
    %302 = vmatprep.subr.mxu0 0.0
    %303 = vmatpush1.msra.mxu0 %v285
    %304 = vmatprep.subr.mxu0 0.0
    %305 = vmatpush1.msra.mxu0 %v284
    %306 = vmatprep.subr.mxu0 0.0
    %307 = vmatpush1.msra.mxu0 %v283
    %308 = vmatprep.subr.mxu0 0.0
    %309 = vmatpush1.msra.mxu0 %v282
    %310 = vmatprep.subr.mxu0 0.0
    %311 = vmatpush1.msra.mxu0 %v281
    %312 = vmatprep.subr.mxu0 0.0
    %313 = vmatpush1.msra.mxu0 %v280
    %314 = vmatprep.subr.mxu0 0.0
    %315 = vmatpush1.msra.mxu0 %v279
    %316 = vmatprep.subr.mxu0 0.0
    %317 = vmatpush1.msra.mxu0 %v278
    %318 = vmatprep.subr.mxu0 0.0
    %319 = vmatpush1.msra.mxu0 %v277
    %320 = vmatprep.subr.mxu0 0.0
    %321 = vmatpush1.msra.mxu0 %v276
    %322 = vmatprep.subr.mxu0 0.0
    %323 = vmatpush1.msra.mxu0 %v275
    %324 = vmatprep.subr.mxu0 0.0
    %325 = vmatpush1.msra.mxu0 %v274
    %326 = vmatprep.subr.mxu0 0.0
    %327 = vmatpush1.msra.mxu0 %v273
    %328 = vmatprep.subr.mxu0 0.0
    %329 = vmatpush2.msra.mxu0 0.0
    %330 = vmatprep.subr.mxu0 0.0
    %331 = vmatpush2.msra.mxu0 0.0
    %332 = vmatprep.subr.mxu0 0.0
    %333 = vmatpush2.msra.mxu0 0.0
    %334 = vmatprep.subr.mxu0 0.0
    %335 = vmatpush2.msra.mxu0 0.0
    %336 = vmatprep.subr.mxu0 0.0
    %337 = vmatpush2.msra.mxu0 0.0
    %338 = vmatprep.subr.mxu0 0.0
    %339 = vmatpush2.msra.mxu0 0.0
    %340 = vmatprep.subr.mxu0 0.0
    %341 = vmatpush2.msra.mxu0 0.0
    %342 = vmatprep.subr.mxu0 0.0
    %343 = vmatpush2.msra.mxu0 0.0
    %344 = vmatprep.subr.mxu0 0.0
    %345 = vmatpush2.msra.mxu0 0.0
    %346 = vmatprep.subr.mxu0 0.0
    %347 = vmatpush2.msra.mxu0 0.0
    %348 = vmatprep.subr.mxu0 0.0
    %349 = vmatpush2.msra.mxu0 0.0
    %350 = vmatprep.subr.mxu0 0.0
    %351 = vmatpush2.msra.mxu0 0.0
    %352 = vmatprep.subr.mxu0 0.0
    %353 = vmatpush2.msra.mxu0 0.0
    %354 = vmatprep.subr.mxu0 0.0
    %355 = vmatpush2.msra.mxu0 0.0
    %356 = vmatprep.subr.mxu0 0.0
    %357 = vmatpush2.msra.mxu0 0.0
    %358 = vmatprep.subr.mxu0 0.0
    %359 = vmatpush2.msra.mxu0 0.0
    %360 = vmatprep.mubr.f32.mxu0 0.0
    %361 = vmatmul.mubr.f32.gmra.mxu0 %v272
    %v362 = vpop.f32.mrf.mxu0
    %v363 = vadd.f32 %v294, %v362
    %v364 = vpop.f32.mrf.mxu0
    %365 = vdwg.mxu0
    %v366 = vmax.f32 %v363, 0.0
    %v367 = vld [vmem:[#allocation7] sm:$0xff]
    %v368 = vld [vmem:[#allocation7 + $0x8] sm:$0xff]
    %v369 = vld [vmem:[#allocation7 + $0x10] sm:$0xff]
    %v370 = vld [vmem:[#allocation7 + $0x18] sm:$0xff]
    %v371 = vld [vmem:[#allocation7 + $0x20] sm:$0xff]
    %v372 = vld [vmem:[#allocation7 + $0x28] sm:$0xff]
    %v373 = vld [vmem:[#allocation7 + $0x30] sm:$0xff]
    %v374 = vld [vmem:[#allocation7 + $0x38] sm:$0xff]
    %v375 = vld [vmem:[#allocation7 + $0x40] sm:$0xff]
    %v376 = vld [vmem:[#allocation7 + $0x48] sm:$0xff]
    %v377 = vld [vmem:[#allocation7 + $0x50] sm:$0xff]
    %v378 = vld [vmem:[#allocation7 + $0x58] sm:$0xff]
    %v379 = vld [vmem:[#allocation7 + $0x60] sm:$0xff]
    %v380 = vld [vmem:[#allocation7 + $0x68] sm:$0xff]
    %v381 = vld [vmem:[#allocation7 + $0x70] sm:$0xff]
    %v382 = vld [vmem:[#allocation7 + $0x78] sm:$0xff]
    %v383 = vld [vmem:[%s8] sm:$0x1]
    %v385 = vlaneseq
    %v386 = vshrl.u32 %v385, 7
    %v387 = vsub.s32 0, %v386
    %v388 = vrot.slane %v383, %v387
    %390 = vmatprep.subr.mxu0 0.0
    %391 = vmatpush1.msra.mxu0 %v382
    %392 = vmatprep.subr.mxu0 0.0
    %393 = vmatpush1.msra.mxu0 %v381
    %394 = vmatprep.subr.mxu0 0.0
    %395 = vmatpush1.msra.mxu0 %v380
    %396 = vmatprep.subr.mxu0 0.0
    %397 = vmatpush1.msra.mxu0 %v379
    %398 = vmatprep.subr.mxu0 0.0
    %399 = vmatpush1.msra.mxu0 %v378
    %400 = vmatprep.subr.mxu0 0.0
    %401 = vmatpush1.msra.mxu0 %v377
    %402 = vmatprep.subr.mxu0 0.0
    %403 = vmatpush1.msra.mxu0 %v376
    %404 = vmatprep.subr.mxu0 0.0
    %405 = vmatpush1.msra.mxu0 %v375
    %406 = vmatprep.subr.mxu0 0.0
    %407 = vmatpush1.msra.mxu0 %v374
    %408 = vmatprep.subr.mxu0 0.0
    %409 = vmatpush1.msra.mxu0 %v373
    %410 = vmatprep.subr.mxu0 0.0
    %411 = vmatpush1.msra.mxu0 %v372
    %412 = vmatprep.subr.mxu0 0.0
    %413 = vmatpush1.msra.mxu0 %v371
    %414 = vmatprep.subr.mxu0 0.0
    %415 = vmatpush1.msra.mxu0 %v370
    %416 = vmatprep.subr.mxu0 0.0
    %417 = vmatpush1.msra.mxu0 %v369
    %418 = vmatprep.subr.mxu0 0.0
    %419 = vmatpush1.msra.mxu0 %v368
    %420 = vmatprep.subr.mxu0 0.0
    %421 = vmatpush1.msra.mxu0 %v367
    %422 = vmatprep.subr.mxu0 0.0
    %423 = vmatpush2.msra.mxu0 0.0
    %424 = vmatprep.subr.mxu0 0.0
    %425 = vmatpush2.msra.mxu0 0.0
    %426 = vmatprep.subr.mxu0 0.0
    %427 = vmatpush2.msra.mxu0 0.0
    %428 = vmatprep.subr.mxu0 0.0
    %429 = vmatpush2.msra.mxu0 0.0
    %430 = vmatprep.subr.mxu0 0.0
    %431 = vmatpush2.msra.mxu0 0.0
    %432 = vmatprep.subr.mxu0 0.0
    %433 = vmatpush2.msra.mxu0 0.0
    %434 = vmatprep.subr.mxu0 0.0
    %435 = vmatpush2.msra.mxu0 0.0
    %436 = vmatprep.subr.mxu0 0.0
    %437 = vmatpush2.msra.mxu0 0.0
    %438 = vmatprep.subr.mxu0 0.0
    %439 = vmatpush2.msra.mxu0 0.0
    %440 = vmatprep.subr.mxu0 0.0
    %441 = vmatpush2.msra.mxu0 0.0
    %442 = vmatprep.subr.mxu0 0.0
    %443 = vmatpush2.msra.mxu0 0.0
    %444 = vmatprep.subr.mxu0 0.0
    %445 = vmatpush2.msra.mxu0 0.0
    %446 = vmatprep.subr.mxu0 0.0
    %447 = vmatpush2.msra.mxu0 0.0
    %448 = vmatprep.subr.mxu0 0.0
    %449 = vmatpush2.msra.mxu0 0.0
    %450 = vmatprep.subr.mxu0 0.0
    %451 = vmatpush2.msra.mxu0 0.0
    %452 = vmatprep.subr.mxu0 0.0
    %453 = vmatpush2.msra.mxu0 0.0
    %454 = vmatprep.mubr.f32.mxu0 0.0
    %455 = vmatmul.mubr.f32.gmra.mxu0 %v366
    %v456 = vpop.f32.mrf.mxu0
    %v457 = vadd.f32 %v388, %v456
    %v458 = vpop.f32.mrf.mxu0
    %459 = vdwg.mxu0
    %v460 = vtanh.pop %v457
    %v461 = vld [vmem:[#allocation8] sm:$0xff]
    %v462 = vld [vmem:[#allocation8 + $0x8] sm:$0xff]
    %v463 = vld [vmem:[#allocation8 + $0x10] sm:$0xff]
    %v464 = vld [vmem:[#allocation8 + $0x18] sm:$0xff]
    %v465 = vld [vmem:[#allocation8 + $0x20] sm:$0xff]
    %v466 = vld [vmem:[#allocation8 + $0x28] sm:$0xff]
    %v467 = vld [vmem:[#allocation8 + $0x30] sm:$0xff]
    %v468 = vld [vmem:[#allocation8 + $0x38] sm:$0xff]
    %v469 = vld [vmem:[#allocation8 + $0x40] sm:$0xff]
    %v470 = vld [vmem:[#allocation8 + $0x48] sm:$0xff]
    %v471 = vld [vmem:[#allocation8 + $0x50] sm:$0xff]
    %v472 = vld [vmem:[#allocation8 + $0x58] sm:$0xff]
    %v473 = vld [vmem:[#allocation8 + $0x60] sm:$0xff]
    %v474 = vld [vmem:[#allocation8 + $0x68] sm:$0xff]
    %v475 = vld [vmem:[#allocation8 + $0x70] sm:$0xff]
    %v476 = vld [vmem:[#allocation8 + $0x78] sm:$0xff]
    %477 = vmatprep.subr.mxu0 0.0
    %478 = vmatpush1.msra.mxu0 %v476
    %479 = vmatprep.subr.mxu0 0.0
    %480 = vmatpush1.msra.mxu0 %v475
    %481 = vmatprep.subr.mxu0 0.0
    %482 = vmatpush1.msra.mxu0 %v474
    %483 = vmatprep.subr.mxu0 0.0
    %484 = vmatpush1.msra.mxu0 %v473
    %485 = vmatprep.subr.mxu0 0.0
    %486 = vmatpush1.msra.mxu0 %v472
    %487 = vmatprep.subr.mxu0 0.0
    %488 = vmatpush1.msra.mxu0 %v471
    %489 = vmatprep.subr.mxu0 0.0
    %490 = vmatpush1.msra.mxu0 %v470
    %491 = vmatprep.subr.mxu0 0.0
    %492 = vmatpush1.msra.mxu0 %v469
    %493 = vmatprep.subr.mxu0 0.0
    %494 = vmatpush1.msra.mxu0 %v468
    %495 = vmatprep.subr.mxu0 0.0
    %496 = vmatpush1.msra.mxu0 %v467
    %497 = vmatprep.subr.mxu0 0.0
    %498 = vmatpush1.msra.mxu0 %v466
    %499 = vmatprep.subr.mxu0 0.0
    %500 = vmatpush1.msra.mxu0 %v465
    %501 = vmatprep.subr.mxu0 0.0
    %502 = vmatpush1.msra.mxu0 %v464
    %503 = vmatprep.subr.mxu0 0.0
    %504 = vmatpush1.msra.mxu0 %v463
    %505 = vmatprep.subr.mxu0 0.0
    %506 = vmatpush1.msra.mxu0 %v462
    %507 = vmatprep.subr.mxu0 0.0
    %508 = vmatpush1.msra.mxu0 %v461
    %509 = vmatprep.subr.mxu0 0.0
    %510 = vmatpush2.msra.mxu0 0.0
    %511 = vmatprep.subr.mxu0 0.0
    %512 = vmatpush2.msra.mxu0 0.0
    %513 = vmatprep.subr.mxu0 0.0
    %514 = vmatpush2.msra.mxu0 0.0
    %515 = vmatprep.subr.mxu0 0.0
    %516 = vmatpush2.msra.mxu0 0.0
    %517 = vmatprep.subr.mxu0 0.0
    %518 = vmatpush2.msra.mxu0 0.0
    %519 = vmatprep.subr.mxu0 0.0
    %520 = vmatpush2.msra.mxu0 0.0
    %521 = vmatprep.subr.mxu0 0.0
    %522 = vmatpush2.msra.mxu0 0.0
    %523 = vmatprep.subr.mxu0 0.0
    %524 = vmatpush2.msra.mxu0 0.0
    %525 = vmatprep.subr.mxu0 0.0
    %526 = vmatpush2.msra.mxu0 0.0
    %527 = vmatprep.subr.mxu0 0.0
    %528 = vmatpush2.msra.mxu0 0.0
    %529 = vmatprep.subr.mxu0 0.0
    %530 = vmatpush2.msra.mxu0 0.0
    %531 = vmatprep.subr.mxu0 0.0
    %532 = vmatpush2.msra.mxu0 0.0
    %533 = vmatprep.subr.mxu0 0.0
    %534 = vmatpush2.msra.mxu0 0.0
    %535 = vmatprep.subr.mxu0 0.0
    %536 = vmatpush2.msra.mxu0 0.0
    %537 = vmatprep.subr.mxu0 0.0
    %538 = vmatpush2.msra.mxu0 0.0
    %539 = vmatprep.subr.mxu0 0.0
    %540 = vmatpush2.msra.mxu0 0.0
    %541 = vmatprep.mubr.f32.mxu0 0.0
    %542 = vmatmul.mubr.f32.gmra.mxu0 %v460
    %v543 = vpop.f32.mrf.mxu0
    %v544 = vadd.f32 0.0, %v543
    %v545 = vpop.f32.mrf.mxu0
    %546 = vdwg.mxu0
    %547 = vst [vmem:[#allocation10] sm:$0xff] %v544
    // Predicated region
    $region58: #{tpu_custom_call.1} parent=1 // pred_check
      _
    $region59: #{tpu_custom_call.1} parent=1 // pred_check_branch
      %549 = sbr.rel (0) target = $region61
    $region60: #{tpu_custom_call.1} parent=1 // pred_region
      %s551 = ssub.s32 128, 128
      %552 = vsyncadd [#allocation4], %s551
      %s554 = sshll.u32 [#allocation10], 4
      %s555 = int_to_ptr.vmem [resolvable:$true] %s554
      %557 = dma.vmem_to_hbm [thread:$0]  %s555, 128, %s10, [#allocation4]
    $region61: #{tpu_custom_call.1} parent=1 // pred_fallthru
      _
    // Predicated region
    $region62: #{tpu_custom_call.1} parent=1 // pred_check
      _
    $region63: #{tpu_custom_call.1} parent=1 // pred_check_branch
      %559 = sbr.rel (0) target = $region65
    $region64: #{tpu_custom_call.1} parent=1 // pred_region
      %560 = dma.done [#allocation4], 128
    $region65: #{tpu_custom_call.1} parent=1 // pred_fallthru
      _
    %561 = vsyncpa [#allocation3], 1
    %562 = vsyncpa [#allocation6], 1
    %563 = vsyncpa [#allocation9], 1
    %564 = vsyncpa [#allocation4], 1

</llo_original>
